<compile_context>
chip_gen: v7x
topology: tpu7x:2x2x1
jax: 0.10.0
libtpu: 0.0.40
codegen_flags: <defaults>
</compile_context>

<pallas_src>
import numpy as np
import jax
import jax.numpy as jnp
from jax.experimental import pallas as pl
from jax.experimental.pallas import tpu as pltpu

# Module constants from the PyTorch spec: self.a = 1, self.b = 0 (folded away).
# For general a/b:  f = a*sigmoid(z) + b,  and the log_det accumulator would be
# initialized with np.log(a) * D_total (the FULL D, not the per-block width).


def _sigmoid_flow_kernel(z_ref, f_ref, logdet_ref):
    k = pl.program_id(1)                      # feature (reduction) axis, last in grid

    z = z_ref[...]
    absz = jnp.abs(z)
    e = jnp.exp(-absz)                        # shared between f and log_det
    inv = 1.0 / (1.0 + e)
    f = jnp.where(z >= 0, inv, e * inv)       # numerically stable sigmoid(z)
    f_ref[...] = f.astype(f_ref.dtype)

    # log(sigmoid(z) * (1 - sigmoid(z))) = -(|z| + 2*log(1 + exp(-|z|)))
    partial = -jnp.sum(absz + 2.0 * jnp.log(1.0 + e), axis=1, keepdims=True)

    @pl.when(k == 0)
    def _():
        # np.log(a) * D == 0 for a == 1.
        logdet_ref[...] = jnp.zeros_like(logdet_ref)

    logdet_ref[...] += partial.astype(logdet_ref.dtype)


def _choose_tiles(B, D, itemsize, target_block_bytes):
    # Feature tiling: only when D is large and lane-aligned (a block's last dim must
    # be a multiple of 128 unless it spans the full dimension).
    tile_d = D
    if D % 128 == 0 and D > 2048:
        m = D // 128
        for j in range(16, 0, -1):            # largest 128*j (<= 2048) dividing D
            if m % j == 0:
                tile_d = 128 * j
                break

    # Batch tiling: big tiles amortize per-step pipeline overhead.
    rows = max(8, target_block_bytes // (tile_d * itemsize))
    tile_b = int(min(1024, (rows // 8) * 8))
    if tile_b >= B:
        tile_b = B                            # full-dim block (any B is legal)
        if B >= 16:                           # keep >=2 batch steps (v7x: 2 TCs)
            tile_b = (((B + 1) // 2) + 7) // 8 * 8
    return tile_b, tile_d


def sigmoid_flow(z, *, tile_b=None, tile_d=None, target_block_bytes=4 * 1024 * 1024):
    """z: (B, D) float array. Returns (f: (B, D), log_det: (B,)) matching
    SigmoidFlow.forward with a=1, b=0."""
    B, D = z.shape
    auto_b, auto_d = _choose_tiles(B, D, z.dtype.itemsize, target_block_bytes)
    tile_b = auto_b if tile_b is None else tile_b
    tile_d = auto_d if tile_d is None else tile_d
    assert tile_d == D or (D % tile_d == 0 and tile_d % 128 == 0), (
        "feature tile must span D or be a 128-multiple divisor of D"
    )

    nb = pl.cdiv(B, tile_b)                   # partial last batch block is masked
    nd = pl.cdiv(D, tile_d)

    f, logdet = pl.pallas_call(
        _sigmoid_flow_kernel,
        out_shape=(
            jax.ShapeDtypeStruct((B, D), z.dtype),
            jax.ShapeDtypeStruct((B, 1), jnp.float32),
        ),
        grid=(nb, nd),
        in_specs=[pl.BlockSpec((tile_b, tile_d), lambda i, k: (i, k))],
        out_specs=(
            pl.BlockSpec((tile_b, tile_d), lambda i, k: (i, k)),
            # constant over k -> VMEM-resident accumulator across the feature axis
            pl.BlockSpec((tile_b, 1), lambda i, k: (i, 0)),
        ),
        compiler_params=pltpu.CompilerParams(
            dimension_semantics=("parallel", "arbitrary"),
            vmem_limit_bytes=32 * 1024 * 1024,
        ),
    )(z)
    return f, logdet[:, 0]


if __name__ == "__main__":
    key = jax.random.PRNGKey(0)
    k1, k2 = jax.random.split(key)

    def reference(z):
        # Mirrors the PyTorch forward (a=1, b=0).
        f = 1.0 / (1.0 + jnp.exp(-z))
        log_det = np.log(1.0) * z.shape[1] + jnp.sum(jnp.log(f * (1.0 - f) + 1e-42), axis=1)
        return f, log_det

    # Small primary shape: SigmoidFlow(D=128), batch of 16 -> exercises 2 batch tiles.
    B, D = 16, 128
    z = jax.random.normal(k1, (B, D), dtype=jnp.float32)
    f, log_det = sigmoid_flow(z)
    jax.block_until_ready((f, log_det))

    f_ref, ld_ref = reference(z)
    assert f.shape == (B, D) and log_det.shape == (B,)
    # Host-side NaN guards mirror the module's torch.isnan checks (no sys.exit here).
    assert not bool(jnp.isnan(jnp.mean(f)))
    assert not bool(jnp.isnan(jnp.mean(log_det)))
    np.testing.assert_allclose(np.asarray(f), np.asarray(f_ref), rtol=1e-5, atol=1e-6)
    np.testing.assert_allclose(np.asarray(log_det), np.asarray(ld_ref), rtol=1e-4, atol=1e-3)

    # Second shape exercising the tiled feature axis (VMEM accumulator, nd=2) and a
    # ragged batch edge (B=40 with 16-row tiles -> masked partial last block).
    B2, D2 = 40, 256
    z2 = jax.random.normal(k2, (B2, D2), dtype=jnp.float32)
    f2, log_det2 = sigmoid_flow(z2, tile_b=16, tile_d=128)
    jax.block_until_ready((f2, log_det2))

    f2_ref, ld2_ref = reference(z2)
    np.testing.assert_allclose(np.asarray(f2), np.asarray(f2_ref), rtol=1e-5, atol=1e-6)
    np.testing.assert_allclose(np.asarray(log_det2), np.asarray(ld2_ref), rtol=1e-4, atol=1e-3)

    print("KERNEL_OK")
</pallas_src>

<mosaic_0001>
module attributes {stable_mosaic.version = 11 : i64} {
  func.func @_sigmoid_flow_kernel(%arg0: i32, %arg1: i32, %arg2: memref<8x128xf32, #tpu.memory_space<vmem>>, %arg3: memref<8x128xf32, #tpu.memory_space<vmem>>, %arg4: memref<8x1xf32, #tpu.memory_space<vmem>>) attributes {dimension_semantics = [#tpu.dimension_semantics<parallel>, #tpu.dimension_semantics<arbitrary>], iteration_bounds = array<i64: 2, 1>, scalar_prefetch = 0 : i64, scratch_operands = 0 : i64, tpu.core_type = #tpu.core_type<tc>, window_params = [{transform_indices = @transform_0, window_bounds = array<i64: 8, 128>}, {transform_indices = @transform_1, window_bounds = array<i64: 8, 128>}, {transform_indices = @transform_2, window_bounds = array<i64: 8, 1>}]} {
    %c0 = arith.constant 0 : index
    %c0_0 = arith.constant 0 : index
    %0 = vector.load %arg2[%c0, %c0_0] : memref<8x128xf32, #tpu.memory_space<vmem>>, vector<8x128xf32>
    %1 = math.absf %0 : vector<8x128xf32>
    %cst = arith.constant 0.000000e+00 : f32
    %2 = vector.broadcast %cst : f32 to vector<8x128xf32>
    %3 = arith.subf %2, %1 : vector<8x128xf32>
    %4 = math.exp %3 : vector<8x128xf32>
    %cst_1 = arith.constant 1.000000e+00 : f32
    %5 = vector.broadcast %cst_1 : f32 to vector<8x128xf32>
    %6 = arith.addf %5, %4 : vector<8x128xf32>
    %cst_2 = arith.constant 1.000000e+00 : f32
    %7 = vector.broadcast %cst_2 : f32 to vector<8x128xf32>
    %8 = arith.divf %7, %6 : vector<8x128xf32>
    %cst_3 = arith.constant 0.000000e+00 : f32
    %9 = vector.broadcast %cst_3 : f32 to vector<8x128xf32>
    %10 = arith.cmpf oge, %0, %9 : vector<8x128xf32>
    %11 = arith.mulf %4, %8 : vector<8x128xf32>
    %12 = arith.select %10, %8, %11 : vector<8x128xi1>, vector<8x128xf32>
    %c0_4 = arith.constant 0 : index
    %c0_5 = arith.constant 0 : index
    %13 = vector.load %arg3[%c0_4, %c0_5] : memref<8x128xf32, #tpu.memory_space<vmem>>, vector<8x128xf32>
    tpu.vector_store %arg3[%c0_4, %c0_5], %12 {strides = array<i32>} : memref<8x128xf32, #tpu.memory_space<vmem>>, vector<8x128xf32>,
    %cst_6 = arith.constant 1.000000e+00 : f32
    %14 = vector.broadcast %cst_6 : f32 to vector<8x128xf32>
    %15 = arith.addf %14, %4 : vector<8x128xf32>
    %16 = math.log %15 : vector<8x128xf32>
    %cst_7 = arith.constant 2.000000e+00 : f32
    %17 = vector.broadcast %cst_7 : f32 to vector<8x128xf32>
    %18 = arith.mulf %17, %16 : vector<8x128xf32>
    %19 = arith.addf %1, %18 : vector<8x128xf32>
    %cst_8 = arith.constant dense<0.000000e+00> : vector<8xf32>
    %20 = vector.multi_reduction <add>, %19, %cst_8 [1] : vector<8x128xf32> to vector<8xf32>
    %21 = vector.shape_cast %20 : vector<8xf32> to vector<8x1xf32>
    %cst_9 = arith.constant 0.000000e+00 : f32
    %22 = vector.broadcast %cst_9 : f32 to vector<8x1xf32>
    %23 = arith.subf %22, %21 : vector<8x1xf32>
    %c0_i32 = arith.constant 0 : i32
    %24 = arith.cmpi eq, %arg1, %c0_i32 : i32
    %25 = arith.extui %24 : i1 to i32
    %c0_i32_10 = arith.constant 0 : i32
    %26 = arith.cmpi ne, %25, %c0_i32_10 : i32
    scf.if %26 {
      %cst_15 = arith.constant 0.000000e+00 : f32
      %30 = vector.broadcast %cst_15 : f32 to vector<8x1xf32>
      %c0_16 = arith.constant 0 : index
      %c0_17 = arith.constant 0 : index
      %31 = vector.load %arg4[%c0_16, %c0_17] : memref<8x1xf32, #tpu.memory_space<vmem>>, vector<8x1xf32>
      tpu.vector_store %arg4[%c0_16, %c0_17], %30 {strides = array<i32>} : memref<8x1xf32, #tpu.memory_space<vmem>>, vector<8x1xf32>,
    } else {
    }
    %c0_11 = arith.constant 0 : index
    %c0_12 = arith.constant 0 : index
    %27 = vector.load %arg4[%c0_11, %c0_12] : memref<8x1xf32, #tpu.memory_space<vmem>>, vector<8x1xf32>
    %28 = arith.addf %27, %23 : vector<8x1xf32>
    %c0_13 = arith.constant 0 : index
    %c0_14 = arith.constant 0 : index
    %29 = vector.load %arg4[%c0_13, %c0_14] : memref<8x1xf32, #tpu.memory_space<vmem>>, vector<8x1xf32>
    tpu.vector_store %arg4[%c0_13, %c0_14], %28 {strides = array<i32>} : memref<8x1xf32, #tpu.memory_space<vmem>>, vector<8x1xf32>,
    return
  }
  func.func @transform_0(%arg0: i32, %arg1: i32) -> (i32, i32) {
    %c0_i32 = arith.constant 0 : i32
    return %arg0, %arg1 : i32, i32
  }
  func.func @transform_1(%arg0: i32, %arg1: i32) -> (i32, i32) {
    %c0_i32 = arith.constant 0 : i32
    return %arg0, %arg1 : i32, i32
  }
  func.func @transform_2(%arg0: i32, %arg1: i32) -> (i32, i32) {
    %c0_i32 = arith.constant 0 : i32
    %c0_i32_0 = arith.constant 0 : i32
    return %arg0, %c0_i32 : i32, i32
  }
}

</mosaic_0001>

<llo_original>
// kernel: tpu_custom_call.1
$region0: #{tpu_custom_call.1}
  #allocation0 [shape = 'u32[]', space=smem, size = 0x4, offset = 0x4, fixed_abs, tag = 'smem constant byte address 0x4 - core index']
  #allocation1 [shape = 'u32[144,128]{1,0:T(1,128)}', space=vmem, size = 0x12000, scoped, tag = 'internal scratch']
  %s0 = inlined_call_operand.hbm [shape: f32[16,128], index: 0, kind: input, shape index: {}]
  %s1 = inlined_call_operand.hbm [shape: f32[16,128], index: 1, kind: output, shape index: {0}]
  %s2 = inlined_call_operand.vmem [shape: f32[16,1], index: 2, kind: output, shape index: {1}]
  %3 = xla_tuple %s1, %s2
  %s4 = sld [smem:[#allocation0]]
  $region53: #{tpu_custom_call.1} parent=0
    _
  %s6 = ssub.s32 1, %s4
  %s7 = scalar_select 0, %s6, %s4
  $region1: #{tpu_custom_call.1} parent=0
    #allocation2 [shape = 'u8[8192]{0}', space=vmem, size = 0x2000, scoped, tag = 'input window, operand 0']
    #allocation3 [shape = 's32[2]{0}', space=sflag, size = 0x8, scoped, tag = 'scoped memory for tpu_custom_call.1']
    #allocation4 [shape = 's32[2]{0}', space=sflag, size = 0x8, scoped, tag = 'scoped memory for tpu_custom_call.1']
    #allocation5 [shape = 'u8[8192]{0}', space=vmem, size = 0x2000, scoped, tag = 'output window, operand 0']
    %8 = vsyncpa [#allocation3], 0
    %s9 = scalar_lea.sflag [#allocation3], 1
    %10 = vsyncpa %s9, 0
    %11 = vsyncpa [#allocation4], 0
    %s12 = scalar_lea.sflag [#allocation4], 1
    %13 = vsyncpa %s12, 0
    loop: start=0, step=1, limit=4
    $region2: #{tpu_custom_call.1} parent=1 // loop_pre_header
      _
    $region3: #{tpu_custom_call.1} parent=1 // loop_header
      %s15 = sphi 0, %s19
      %p16 = scmp.ge.s32.totalorder %s15, 4
      %s22 = sphi 0, %s34
      %s23 = sphi 0, %s30
      %s24 = sphi 0, %s22
      %s25 = sphi 0, %s23
      %s26 = sphi 0, %s24
      %s27 = sphi 0, %s25
      %s39 = sphi 0, %s41
      %s42 = sphi 0, %s39
      %s43 = sphi 0, %s42
      %s59 = sphi 0, %s43
      %s67 = sphi 0, %s69
      %s70 = sphi 0, %s67
      %s71 = sphi 0, %s70
      %s87 = sphi 0, %s71
      %s93 = sphi 0, %s95
      %s96 = sphi 0, %s93
      %s97 = sphi 0, %s96
      %s113 = sphi 0, %s97
    $region4: #{tpu_custom_call.1} parent=1 // loop_header_branch
      %18 = sbr.rel (%p16) target = $region8
    $region5: #{tpu_custom_call.1} parent=1 // loop_body
      %s20 = ssub.s32 %s15, 1
      %s21 = ssub.s32 %s15, 2
      %s28 = sadd.s32 1, %s23
      %p29 = scmp.ge.s32.totalorder %s28, 1
      %s30 = scalar_select %p29, 0, %s28
      %s31 = sadd.s32 1, %s22
      %s32 = scalar_select %p29, %s31, %s22
      %p33 = scmp.ge.s32.totalorder %s32, 2
      %s34 = scalar_select %p33, 0, %s32
      %s35 = ssub.s32 %s22, %s34
      %s36 = ssub.s32 %s23, %s30
      %s37 = sor.u32 %s35, %s36
      %p38 = scmp.eq.s32.totalorder %s37, 0
      %s40 = sadd.s32 %s39, 1
      %s41 = scalar_select %p38, %s39, %s40
      %p44 = pneg %p38
      %p45 = scmp.eq.s32.totalorder %s15, 1
      %p46 = por %p44, %p45
      %p47 = scmp.ne.s32.totalorder %s39, %s42
      %p48 = scmp.eq.s32.totalorder %s15, 0
      %p49 = por %p47, %p48
      %p50 = scmp.ne.s32.totalorder %s39, %s42
      %p51 = scmp.eq.s32.totalorder %s20, 1
      %p52 = por %p50, %p51
      %p53 = scmp.ne.s32.totalorder %s42, %s43
      %p54 = scmp.eq.s32.totalorder %s20, 0
      %p55 = por %p53, %p54
      %p56 = scmp.ne.s32.totalorder %s42, %s43
      %p57 = scmp.eq.s32.totalorder %s21, 1
      %p58 = por %p56, %p57
      %p60 = scmp.ne.s32.totalorder %s43, %s59
      %p61 = scmp.eq.s32.totalorder %s21, 0
      %p62 = por %p60, %p61
      %s63 = ssub.s32 %s22, %s34
      %s64 = ssub.s32 %s23, %s30
      %s65 = sor.u32 %s63, %s64
      %p66 = scmp.eq.s32.totalorder %s65, 0
      %s68 = sadd.s32 %s67, 1
      %s69 = scalar_select %p66, %s67, %s68
      %p72 = pneg %p66
      %p73 = scmp.eq.s32.totalorder %s15, 1
      %p74 = por %p72, %p73
      %p75 = scmp.ne.s32.totalorder %s67, %s70
      %p76 = scmp.eq.s32.totalorder %s15, 0
      %p77 = por %p75, %p76
      %p78 = scmp.ne.s32.totalorder %s67, %s70
      %p79 = scmp.eq.s32.totalorder %s20, 1
      %p80 = por %p78, %p79
      %p81 = scmp.ne.s32.totalorder %s70, %s71
      %p82 = scmp.eq.s32.totalorder %s20, 0
      %p83 = por %p81, %p82
      %p84 = scmp.ne.s32.totalorder %s70, %s71
      %p85 = scmp.eq.s32.totalorder %s21, 1
      %p86 = por %p84, %p85
      %p88 = scmp.ne.s32.totalorder %s71, %s87
      %p89 = scmp.eq.s32.totalorder %s21, 0
      %p90 = por %p88, %p89
      %s91 = ssub.s32 %s22, %s34
      %p92 = scmp.eq.s32.totalorder %s91, 0
      %s94 = sadd.s32 %s93, 1
      %s95 = scalar_select %p92, %s93, %s94
      %p98 = pneg %p92
      %p99 = scmp.eq.s32.totalorder %s15, 1
      %p100 = por %p98, %p99
      %p101 = scmp.ne.s32.totalorder %s93, %s96
      %p102 = scmp.eq.s32.totalorder %s15, 0
      %p103 = por %p101, %p102
      %p104 = scmp.ne.s32.totalorder %s93, %s96
      %p105 = scmp.eq.s32.totalorder %s20, 1
      %p106 = por %p104, %p105
      %p107 = scmp.ne.s32.totalorder %s96, %s97
      %p108 = scmp.eq.s32.totalorder %s20, 0
      %p109 = por %p107, %p108
      %p110 = scmp.ne.s32.totalorder %s96, %s97
      %p111 = scmp.eq.s32.totalorder %s21, 1
      %p112 = por %p110, %p111
      %p114 = scmp.ne.s32.totalorder %s97, %s113
      %p115 = scmp.eq.s32.totalorder %s21, 0
      %p116 = por %p114, %p115
      %p117 = scmp.le.s32.totalorder 1, %s15
      %p118 = scmp.lt.s32.totalorder %s15, 3
      %p119 = pnand %p117, %p118
      %p120 = pneg %p119
      // Predicated region
      $region9: #{tpu_custom_call.1} parent=5 // pred_check
        _
      $region10: #{tpu_custom_call.1} parent=5 // pred_check_branch
        %122 = sbr.rel (%p119) target = $region12
      $region11: #{tpu_custom_call.1} parent=5 // pred_region
        %s123 = ssub.s32 %s15, 1
      $region12: #{tpu_custom_call.1} parent=5 // pred_fallthru
        _
      %p124 = scmp.lt.s32.totalorder %s15, 2
      // Predicated region
      $region13: #{tpu_custom_call.1} parent=5 // pred_check
        %p125 = pneg %p124
      $region14: #{tpu_custom_call.1} parent=5 // pred_check_branch
        %127 = sbr.rel (%p125) target = $region16
      $region15: #{tpu_custom_call.1} parent=5 // pred_region
        // Predicated region
        $region17: #{tpu_custom_call.1} parent=15 // pred_check
          %p128 = pneg %p49
        $region18: #{tpu_custom_call.1} parent=15 // pred_check_branch
          %130 = sbr.rel (%p128) target = $region20
        $region19: #{tpu_custom_call.1} parent=15 // pred_region
          %s131 = sand.u32 %s39, 1
          %s132 = scalar_lea.sflag [#allocation3], %s131
          %s133 = sand.u32 %s39, 1
          %s134 = smul.addr %s133, 8
          %s135 = scalar_lea.vmem [#allocation2], %s134
          %s137 = ssub.s32 128, 128
          %138 = vsyncadd %s132, %s137
          %s139 = sadd.s32 %s23, %s22
          %s140 = smul.addr %s139, 128
          %s141 = scalar_lea.hbm %s0, %s140
          %s143 = sshll.u32 %s135, 4
          %s144 = int_to_ptr.vmem [resolvable:$true] %s143
          %146 = dma.hbm_to_vmem [thread:$0]  %s141, 128, %s144, %s132
        $region20: #{tpu_custom_call.1} parent=15 // pred_fallthru
          _
      $region16: #{tpu_custom_call.1} parent=5 // pred_fallthru
        _
      %p147 = scmp.le.s32.totalorder 1, %s15
      %p148 = scmp.lt.s32.totalorder %s15, 3
      %p149 = pnand %p147, %p148
      %p150 = pneg %p149
      // Predicated region
      $region21: #{tpu_custom_call.1} parent=5 // pred_check
        _
      $region22: #{tpu_custom_call.1} parent=5 // pred_check_branch
        %152 = sbr.rel (%p149) target = $region24
      $region23: #{tpu_custom_call.1} parent=5 // pred_region
        %s153 = ssub.s32 %s15, 1
        %s154 = sand.u32 %s42, 1
        %s155 = scalar_lea.sflag [#allocation3], %s154
        %s156 = sand.u32 %s42, 1
        %s157 = smul.addr %s156, 8
        %s158 = scalar_lea.vmem [#allocation2], %s157
        // Predicated region
        $region25: #{tpu_custom_call.1} parent=23 // pred_check
          %p159 = pneg %p55
        $region26: #{tpu_custom_call.1} parent=23 // pred_check_branch
          %161 = sbr.rel (%p159) target = $region28
        $region27: #{tpu_custom_call.1} parent=23 // pred_region
          %162 = dma.done %s155, 128
        $region28: #{tpu_custom_call.1} parent=23 // pred_fallthru
          _
        %s163 = sand.u32 %s42, 1
        %s164 = scalar_lea.sflag [#allocation3], %s163
        %s165 = sand.u32 %s42, 1
        %s166 = smul.addr %s165, 8
        %s167 = scalar_lea.vmem [#allocation2], %s166
        %p168 = pneg %p55
        %p169 = pneg %p52
        %p170 = pneg %p83
        %p171 = pneg %p80
        %s172 = sand.u32 %s70, 1
        %s173 = scalar_lea.sflag [#allocation4], %s172
        %s174 = sand.u32 %s70, 1
        %s175 = smul.addr %s174, 8
        %s176 = scalar_lea.vmem [#allocation5], %s175
        %p177 = pneg %p109
        %p178 = pneg %p106
        %p179 = scmp.lt.s32.totalorder %s24, 1
        %s180 = scalar_select %p179, %s24, 1
        %s181 = smul.addr %s180, 8
        %s182 = scalar_lea.vmem %s2, %s181
        %p183 = scmp.lt.s32.totalorder %s24, 1
        %s184 = scalar_select %p183, %s24, 1
        %s185 = smul.addr %s184, 8
        %s186 = scalar_lea.vmem %s2, %s185
        %v187 = vld [vmem:[%s158] sm:$0xff]
        %v188 = vand.u32 2147483647, %v187
        %v189 = vsub.f32 0.0, %v188
        %v190 = vmul.f32 %v189, 1.442695
        %v191 = vpow.pop %v190
        %v192 = vadd.f32 %v191, 1.0
        %v193 = vrcp.pop %v192
        %v194 = vmul.f32 1.0, %v193
        %vm195 = vcmp.ge.f32.partialorder %v187, 0.0
        %v196 = vmul.f32 %v191, %v194
        %v197 = vsel %vm195, %v194, %v196
        %198 = vst [vmem:[%s176] sm:$0xff] %v197
        %v199 = vlog2.pop %v192
        %v200 = vmul.f32 %v199, 0.6931472
        %v201 = vmul.f32 %v200, 2.0
        %v202 = vadd.f32 %v188, %v201
        %203 = vadd.xlane.f32.xlu0 %v202
        %v204 = vpop.xlane.xlu0 %203
        %v205 = vsub.f32 0.0, %v204
        %p206 = scmp.eq.s32.totalorder %s25, 0
        // Predicated region
        $region29: #{tpu_custom_call.1} parent=23 // pred_check
          %p207 = pneg %p206
        $region30: #{tpu_custom_call.1} parent=23 // pred_check_branch
          %209 = sbr.rel (%p207) target = $region32
        $region31: #{tpu_custom_call.1} parent=23 // pred_region
          %vm210 = vcmask 7168
          %211 = vst.msk [vmem:[%s186] sm:$0xff] %vm210, 0.0
        $region32: #{tpu_custom_call.1} parent=23 // pred_fallthru
          _
        %v212 = vld [vmem:[%s186] sm:$0xff]
        %v213 = vadd.f32 %v212, %v205
        %vm214 = vcmask 7168
        %215 = vst.msk [vmem:[%s186] sm:$0xff] %vm214, %v213
        %s216 = sand.u32 %s70, 1
        %s217 = scalar_lea.sflag [#allocation4], %s216
        %s218 = sand.u32 %s70, 1
        %s219 = smul.addr %s218, 8
        %s220 = scalar_lea.vmem [#allocation5], %s219
        %p221 = scmp.lt.s32.totalorder %s24, 1
        %s222 = scalar_select %p221, %s24, 1
        %s223 = smul.addr %s222, 8
        %s224 = scalar_lea.vmem %s2, %s223
        // Predicated region
        $region33: #{tpu_custom_call.1} parent=23 // pred_check
          %p225 = pneg %p80
        $region34: #{tpu_custom_call.1} parent=23 // pred_check_branch
          %227 = sbr.rel (%p225) target = $region36
        $region35: #{tpu_custom_call.1} parent=23 // pred_region
          %s229 = ssub.s32 128, 128
          %230 = vsyncadd %s217, %s229
          %s231 = sadd.s32 %s25, %s24
          %s232 = smul.addr %s231, 128
          %s233 = scalar_lea.hbm %s1, %s232
          %s235 = sshll.u32 %s220, 4
          %s236 = int_to_ptr.vmem [resolvable:$true] %s235
          %238 = dma.vmem_to_hbm [thread:$0]  %s236, 128, %s233, %s217
        $region36: #{tpu_custom_call.1} parent=23 // pred_fallthru
          _
        // Predicated region
        $region37: #{tpu_custom_call.1} parent=23 // pred_check
          %p239 = pneg %p106
        $region38: #{tpu_custom_call.1} parent=23 // pred_check_branch
          %241 = sbr.rel (%p239) target = $region40
        $region39: #{tpu_custom_call.1} parent=23 // pred_region
          _
        $region40: #{tpu_custom_call.1} parent=23 // pred_fallthru
          _
      $region24: #{tpu_custom_call.1} parent=5 // pred_fallthru
        _
      %p242 = scmp.le.s32.totalorder 2, %s15
      // Predicated region
      $region41: #{tpu_custom_call.1} parent=5 // pred_check
        %p243 = pneg %p242
      $region42: #{tpu_custom_call.1} parent=5 // pred_check_branch
        %245 = sbr.rel (%p243) target = $region44
      $region43: #{tpu_custom_call.1} parent=5 // pred_region
        %s246 = ssub.s32 %s15, 2
        // Predicated region
        $region45: #{tpu_custom_call.1} parent=43 // pred_check
          %p247 = pneg %p86
        $region46: #{tpu_custom_call.1} parent=43 // pred_check_branch
          %249 = sbr.rel (%p247) target = $region48
        $region47: #{tpu_custom_call.1} parent=43 // pred_region
          %s250 = sand.u32 %s71, 1
          %s251 = scalar_lea.sflag [#allocation4], %s250
          %s252 = sand.u32 %s71, 1
          %s253 = smul.addr %s252, 8
          %s254 = scalar_lea.vmem [#allocation5], %s253
          %255 = dma.done %s251, 128
        $region48: #{tpu_custom_call.1} parent=43 // pred_fallthru
          _
        // Predicated region
        $region49: #{tpu_custom_call.1} parent=43 // pred_check
          %p256 = pneg %p112
        $region50: #{tpu_custom_call.1} parent=43 // pred_check_branch
          %258 = sbr.rel (%p256) target = $region52
        $region51: #{tpu_custom_call.1} parent=43 // pred_region
          %p259 = scmp.lt.s32.totalorder %s26, 1
          %s260 = scalar_select %p259, %s26, 1
          %s261 = smul.addr %s260, 8
          %s262 = scalar_lea.vmem %s2, %s261
        $region52: #{tpu_custom_call.1} parent=43 // pred_fallthru
          _
      $region44: #{tpu_custom_call.1} parent=5 // pred_fallthru
        _
    $region6: #{tpu_custom_call.1} parent=1 // loop_footer
      %s19 = sadd.s32 1, %s15
    $region7: #{tpu_custom_call.1} parent=1 // loop_footer_branch
      %14 = sbr.rel target = $region3
    $region8: #{tpu_custom_call.1} parent=1 // loop_exit
      _
    %263 = vsyncpa [#allocation3], 1
    %s264 = scalar_lea.sflag [#allocation3], 1
    %265 = vsyncpa %s264, 1
    %266 = vsyncpa [#allocation4], 1
    %s267 = scalar_lea.sflag [#allocation4], 1
    %268 = vsyncpa %s267, 1

</llo_original>
